<compile_context>
chip_gen: v6e
topology: v6e:2x2x1
jax: 0.10.0
libtpu: 0.0.40
codegen_flags: <defaults>
</compile_context>

<pallas_src>
import jax
import jax.numpy as jnp
from jax.experimental import pallas as pl
from jax.experimental.pallas import tpu as pltpu

_MiB = 1024 * 1024


def _round_up(x, m):
    return (x + m - 1) // m * m


def _cdiv(a, b):
    return -(-a // b)


# --------------------------------------------------------------------------- #
# Kernels
# --------------------------------------------------------------------------- #
def _plusminus_kernel_fused(x_ref, w1_ref, w2_ref, o_ref):
    """Whole dff resident: single step, write the output tile directly."""
    h = jnp.dot(x_ref[...], w1_ref[...], preferred_element_type=jnp.float32)
    plus = jnp.maximum(h, 0.0)
    minus = plus - h                      # relu(-h) == relu(h) - h
    act_dt = w2_ref.dtype                 # feed the MXU in the weight dtype
    out = (
        jnp.dot(plus.astype(act_dt), w2_ref[0], preferred_element_type=jnp.float32)
        + jnp.dot(minus.astype(act_dt), w2_ref[1], preferred_element_type=jnp.float32)
    )
    o_ref[...] = out.astype(o_ref.dtype)


def _plusminus_kernel_acc(x_ref, w1_ref, w2_ref, o_ref, acc_ref):
    """dff tiled on grid axis 1 ("arbitrary") with an f32 VMEM accumulator."""
    k = pl.program_id(1)

    @pl.when(k == 0)
    def _init():
        acc_ref[...] = jnp.zeros_like(acc_ref)

    h = jnp.dot(x_ref[...], w1_ref[...], preferred_element_type=jnp.float32)
    plus = jnp.maximum(h, 0.0)
    minus = plus - h                      # relu(-h) == relu(h) - h
    act_dt = w2_ref.dtype
    acc_ref[...] += (
        jnp.dot(plus.astype(act_dt), w2_ref[0], preferred_element_type=jnp.float32)
        + jnp.dot(minus.astype(act_dt), w2_ref[1], preferred_element_type=jnp.float32)
    )

    @pl.when(k == pl.num_programs(1) - 1)
    def _finalize():
        o_ref[...] = acc_ref[...].astype(o_ref.dtype)


# --------------------------------------------------------------------------- #
# Tile selection / VMEM accounting
# --------------------------------------------------------------------------- #
def _vmem_capacity_bytes():
    """Per-TensorCore VMEM capacity; conservative fallback if undetectable."""
    try:
        info = pltpu.get_tpu_info()
        cap = getattr(info, "vmem_capacity_bytes", None)
        if cap:
            return int(cap)
    except Exception:
        pass
    try:
        kind = jax.devices()[0].device_kind.lower()
    except Exception:
        kind = ""
    if any(tag in kind for tag in ("v4", "v5", "v6")):
        return 128 * _MiB
    return 64 * _MiB  # conservative (v7x-class) default


def _vmem_bytes(tm, tdff, dmodel, x_item, w_item, act_item, out_item, with_acc):
    x_blk = tm * dmodel * x_item
    w1_blk = dmodel * tdff * w_item
    w2_blk = 2 * tdff * dmodel * w_item
    o_blk = tm * dmodel * out_item
    bufs = 2 * (x_blk + w1_blk + w2_blk + o_blk)   # Pallas double-buffers blocks
    # VMEM-resident intermediates between the two GEMMs:
    #   h (f32), relu(h)/relu(-h) in the matmul dtype, two GEMM2 f32 results.
    inter = tm * tdff * (4 + 2 * act_item) + 2 * tm * dmodel * 4
    acc = tm * dmodel * 4 if with_acc else 0
    return bufs + inter + acc


def _pick_tiles(M, dff, dmodel, x_item, w_item, act_item, out_item, budget):
    def fits(tm, tdff, with_acc):
        return _vmem_bytes(tm, tdff, dmodel, x_item, w_item, act_item,
                           out_item, with_acc) <= budget

    tm_opts = [t for t in (2048, 1024, 512, 256, 128) if t <= M]
    if not tm_opts:
        tm_opts = [_round_up(max(M, 1), 8)]

    # Lane-aligned dff tiles (multiples of 128 dividing dff), largest first.
    tiled_opts = sorted({t for t in range(128, dff, 128) if dff % t == 0},
                        reverse=True)

    # Phase 1: weights fully VMEM-resident -> single reduction step; W1/W2 are
    # DMA'd from HBM exactly once per call (block index constant over the grid).
    for tm in tm_opts:
        if fits(tm, dff, with_acc=False):
            return tm, dff

    # Phase 2: tiled reduction.  Prefer the largest row tile (weight
    # re-streaming scales as (M/tm)*|W1+W2|) and, within it, the largest dff
    # tile (>= 256 when possible: better MXU cadence, fewer accumulator passes).
    for prefer in ([t for t in tiled_opts if t >= 256], tiled_opts):
        for tm in tm_opts:
            for tdff in prefer:
                if fits(tm, tdff, with_acc=True):
                    return tm, tdff

    # Nothing fits: degrade to smallest candidates rather than silently blowing
    # far past the budget (vmem_limit_bytes still caps the compiler).
    return tm_opts[-1], (tiled_opts[-1] if tiled_opts else dff)


# --------------------------------------------------------------------------- #
# Public wrapper
# --------------------------------------------------------------------------- #
def plusminus_ff(x, w1, w2, *, tm=None, tdff=None, vmem_budget_bytes=None,
                 matmul_dtype=None):
    """PlusMinusFF forward: concat([relu(x@W1), relu(-(x@W1))]) @ W2.

    x:  (..., dmodel);  w1: (dmodel, dff);  w2: (2*dff, dmodel)
    matmul_dtype: optionally cast x/W1/W2 (e.g. jnp.bfloat16) so f32 callers run
        the bf16-native MXU at full rate on v6e/v7x; accumulation stays f32 and
        the output keeps x.dtype.  Default None = no precision change.
    """
    orig_shape = x.shape
    dmodel = orig_shape[-1]
    dff = w1.shape[1]
    assert w1.shape == (dmodel, dff)
    assert w2.shape == (2 * dff, dmodel)

    out_dtype = x.dtype
    if matmul_dtype is not None:
        x = x.astype(matmul_dtype)
        w1 = w1.astype(matmul_dtype)
        w2 = w2.astype(matmul_dtype)

    x2 = x.reshape(-1, dmodel)
    M = x2.shape[0]
    # (2, dff, dmodel) view: half 0 multiplies relu(h), half 1 relu(-h).
    # Pure reshape -> no extra HBM copy of the weight.
    w2_3d = w2.reshape(2, dff, dmodel)

    x_item = jnp.dtype(x.dtype).itemsize
    w_item = jnp.dtype(w1.dtype).itemsize
    act_item = w_item                      # activations cast to the weight dtype
    out_item = jnp.dtype(out_dtype).itemsize

    cap = _vmem_capacity_bytes()
    if vmem_budget_bytes is None:
        # ~48 MiB of blocks on 64 MiB chips (v7x); ~104 MiB on 128 MiB chips
        # (v5e/v6e) so W1/W2 stay VMEM-resident whenever they fit.
        vmem_budget_bytes = max(min(cap - 16 * _MiB, 104 * _MiB), 16 * _MiB)
    # Leave headroom below physical VMEM for Mosaic-internal scratch/semaphores.
    vmem_limit = int(max(min(cap - 8 * _MiB, vmem_budget_bytes + 8 * _MiB),
                         24 * _MiB))

    tm_user, tdff_user = tm, tdff
    auto_tm, auto_tdff = _pick_tiles(M, dff, dmodel, x_item, w_item, act_item,
                                     out_item, vmem_budget_bytes)
    tm = auto_tm if tm_user is None else tm_user
    tdff = auto_tdff if tdff_user is None else tdff_user
    assert dff % tdff == 0, "dff tile must divide dff"
    assert tdff == dff or tdff % 128 == 0, "dff tile must be lane-aligned"

    # Megacore: keep >= 2 row tiles when possible so both TensorCores get work.
    if tm_user is None and _cdiv(M, tm) == 1:
        tm = _round_up(_cdiv(M, 2), 8) if M >= 16 else M
    grid_m = _cdiv(M, tm)      # ragged last tile is masked by Pallas; no pad/slice
    kdff = dff // tdff

    flops = 6 * M * dff * dmodel          # GEMM1 (2*M*dff*dm) + GEMM2 (2*M*2dff*dm)
    weight_bytes = (w1.size + w2.size) * w_item
    weight_passes = 1 if kdff == 1 else grid_m
    bytes_accessed = int(M * dmodel * x_item + weight_passes * weight_bytes
                         + M * dmodel * out_item)

    if kdff == 1:
        grid = (grid_m,)
        in_specs = [
            pl.BlockSpec((tm, dmodel), lambda i: (i, 0)),
            pl.BlockSpec((dmodel, dff), lambda i: (0, 0)),        # fetched once
            pl.BlockSpec((2, dff, dmodel), lambda i: (0, 0, 0)),  # fetched once
        ]
        out_specs = pl.BlockSpec((tm, dmodel), lambda i: (i, 0))
        scratch_shapes = []
        kernel = _plusminus_kernel_fused
        dim_sem = ("parallel",)
    else:
        grid = (grid_m, kdff)             # reduction axis last
        in_specs = [
            pl.BlockSpec((tm, dmodel), lambda i, k: (i, 0)),
            pl.BlockSpec((dmodel, tdff), lambda i, k: (0, k)),
            pl.BlockSpec((2, tdff, dmodel), lambda i, k: (0, k, 0)),
        ]
        out_specs = pl.BlockSpec((tm, dmodel), lambda i, k: (i, 0))
        scratch_shapes = [pltpu.VMEM((tm, dmodel), jnp.float32)]
        kernel = _plusminus_kernel_acc
        dim_sem = ("parallel", "arbitrary")

    out = pl.pallas_call(
        kernel,
        out_shape=jax.ShapeDtypeStruct((M, dmodel), out_dtype),
        grid_spec=pltpu.PrefetchScalarGridSpec(
            num_scalar_prefetch=0,
            grid=grid,
            in_specs=in_specs,
            out_specs=out_specs,
            scratch_shapes=scratch_shapes,
        ),
        compiler_params=pltpu.CompilerParams(
            dimension_semantics=dim_sem,
            vmem_limit_bytes=vmem_limit,
        ),
        cost_estimate=pl.CostEstimate(
            flops=int(flops), transcendentals=0, bytes_accessed=bytes_accessed),
    )(x2, w1, w2_3d)

    return out.reshape(orig_shape)


# --------------------------------------------------------------------------- #
# Reference + test harness
# --------------------------------------------------------------------------- #
def plusminus_ff_ref(x, w1, w2):
    h = jnp.einsum("...d,df->...f", x, w1, precision=jax.lax.Precision.HIGHEST)
    cat = jnp.concatenate([jnp.maximum(h, 0.0), jnp.maximum(-h, 0.0)], axis=-1)
    return jnp.einsum("...f,fd->...d", cat, w2,
                      precision=jax.lax.Precision.HIGHEST)


def _make_inputs(key, batch, seq, dmodel, dff, dtype=jnp.float32):
    kx, k1, k2 = jax.random.split(key, 3)
    x = jax.random.normal(kx, (batch, seq, dmodel), dtype=dtype)
    w1 = jax.random.uniform(
        k1, (dmodel, dff), dtype=dtype,
        minval=-(dmodel ** -0.5), maxval=(dmodel ** -0.5))
    w2 = jax.random.uniform(
        k2, (2 * dff, dmodel), dtype=dtype,
        minval=-((2 * dff) ** -0.5), maxval=((2 * dff) ** -0.5))
    return x, w1, w2


if __name__ == "__main__":
    key = jax.random.PRNGKey(0)
    k_a, k_b = jax.random.split(key)

    # Case 1: odd row count (ragged last row tile handled in-kernel, no wrapper
    # pad/slice) + explicit dff tile -> exercises the accumulator grid axis.
    x, w1, w2 = _make_inputs(k_a, batch=2, seq=9, dmodel=128, dff=512)
    out = jax.block_until_ready(plusminus_ff(x, w1, w2, tdff=256))
    ref = plusminus_ff_ref(x, w1, w2)
    assert out.shape == x.shape
    assert jnp.allclose(out, ref, atol=2e-3, rtol=2e-3)

    # Case 2: fully automatic tiling -> weights VMEM-resident (single reduction
    # step, no accumulator scratch) and >= 2 row tiles for megacore.
    x, w1, w2 = _make_inputs(k_b, batch=4, seq=64, dmodel=128, dff=512)
    out = jax.block_until_ready(plusminus_ff(x, w1, w2))
    ref = plusminus_ff_ref(x, w1, w2)
    assert out.shape == x.shape
    assert jnp.allclose(out, ref, atol=2e-3, rtol=2e-3)

    print("KERNEL_OK")
</pallas_src>

<mosaic_0001>
module attributes {stable_mosaic.version = 11 : i64} {
  func.func @_plusminus_kernel_acc(%arg0: i32, %arg1: i32, %arg2: memref<16x128xf32, #tpu.memory_space<vmem>>, %arg3: memref<128x256xf32, #tpu.memory_space<vmem>>, %arg4: memref<2x256x128xf32, #tpu.memory_space<vmem>>, %arg5: memref<16x128xf32, #tpu.memory_space<vmem>>, %arg6: memref<16x128xf32, #tpu.memory_space<vmem>>) attributes {dimension_semantics = [#tpu.dimension_semantics<parallel>, #tpu.dimension_semantics<arbitrary>], iteration_bounds = array<i64: 2, 2>, scalar_prefetch = 0 : i64, scratch_operands = 1 : i64, tpu.core_type = #tpu.core_type<tc>, window_params = [{transform_indices = @transform_0, window_bounds = array<i64: 16, 128>}, {transform_indices = @transform_1, window_bounds = array<i64: 128, 256>}, {transform_indices = @transform_2, window_bounds = array<i64: 2, 256, 128>}, {transform_indices = @transform_3, window_bounds = array<i64: 16, 128>}]} {
    %c0_i32 = arith.constant 0 : i32
    %0 = arith.cmpi eq, %arg1, %c0_i32 : i32
    %1 = arith.extui %0 : i1 to i32
    %c0_i32_0 = arith.constant 0 : i32
    %2 = arith.cmpi ne, %1, %c0_i32_0 : i32
    scf.if %2 {
      %cst_17 = arith.constant 0.000000e+00 : f32
      %22 = vector.broadcast %cst_17 : f32 to vector<16x128xf32>
      %c0_18 = arith.constant 0 : index
      %c0_19 = arith.constant 0 : index
      %23 = vector.load %arg6[%c0_18, %c0_19] : memref<16x128xf32, #tpu.memory_space<vmem>>, vector<16x128xf32>
      tpu.vector_store %arg6[%c0_18, %c0_19], %22 {strides = array<i32>} : memref<16x128xf32, #tpu.memory_space<vmem>>, vector<16x128xf32>,
    } else {
    }
    %c0 = arith.constant 0 : index
    %c0_1 = arith.constant 0 : index
    %3 = vector.load %arg2[%c0, %c0_1] : memref<16x128xf32, #tpu.memory_space<vmem>>, vector<16x128xf32>
    %c0_2 = arith.constant 0 : index
    %c0_3 = arith.constant 0 : index
    %4 = vector.load %arg3[%c0_2, %c0_3] : memref<128x256xf32, #tpu.memory_space<vmem>>, vector<128x256xf32>
    %cst = arith.constant dense<0.000000e+00> : vector<16x256xf32>
    %5 = tpu.matmul %3, %4, %cst {dimension_numbers = #tpu.dot_dimension_numbers<[1], [0], [0], [1], [0, 0, 1, 1], [], []>} : vector<16x128xf32>, vector<128x256xf32>, vector<16x256xf32> -> vector<16x256xf32>
    %cst_4 = arith.constant 0.000000e+00 : f32
    %6 = vector.broadcast %cst_4 : f32 to vector<16x256xf32>
    %7 = arith.maximumf %5, %6 : vector<16x256xf32>
    %8 = arith.subf %7, %5 : vector<16x256xf32>
    %c0_5 = arith.constant 0 : index
    %c0_6 = arith.constant 0 : index
    %9 = vector.load %arg6[%c0_5, %c0_6] : memref<16x128xf32, #tpu.memory_space<vmem>>, vector<16x128xf32>
    %c0_7 = arith.constant 0 : index
    %c0_8 = arith.constant 0 : index
    %c0_9 = arith.constant 0 : index
    %10 = vector.load %arg4[%c0_7, %c0_8, %c0_9] : memref<2x256x128xf32, #tpu.memory_space<vmem>>, vector<1x256x128xf32>
    %11 = vector.shape_cast %10 : vector<1x256x128xf32> to vector<256x128xf32>
    %cst_10 = arith.constant dense<0.000000e+00> : vector<16x128xf32>
    %12 = tpu.matmul %7, %11, %cst_10 {dimension_numbers = #tpu.dot_dimension_numbers<[1], [0], [0], [1], [0, 0, 1, 1], [], []>} : vector<16x256xf32>, vector<256x128xf32>, vector<16x128xf32> -> vector<16x128xf32>
    %c1 = arith.constant 1 : index
    %c0_11 = arith.constant 0 : index
    %c0_12 = arith.constant 0 : index
    %13 = vector.load %arg4[%c1, %c0_11, %c0_12] : memref<2x256x128xf32, #tpu.memory_space<vmem>>, vector<1x256x128xf32>
    %14 = vector.shape_cast %13 : vector<1x256x128xf32> to vector<256x128xf32>
    %cst_13 = arith.constant dense<0.000000e+00> : vector<16x128xf32>
    %15 = tpu.matmul %8, %14, %cst_13 {dimension_numbers = #tpu.dot_dimension_numbers<[1], [0], [0], [1], [0, 0, 1, 1], [], []>} : vector<16x256xf32>, vector<256x128xf32>, vector<16x128xf32> -> vector<16x128xf32>
    %16 = arith.addf %12, %15 : vector<16x128xf32>
    %17 = arith.addf %9, %16 : vector<16x128xf32>
    %c0_14 = arith.constant 0 : index
    %c0_15 = arith.constant 0 : index
    %18 = vector.load %arg6[%c0_14, %c0_15] : memref<16x128xf32, #tpu.memory_space<vmem>>, vector<16x128xf32>
    tpu.vector_store %arg6[%c0_14, %c0_15], %17 {strides = array<i32>} : memref<16x128xf32, #tpu.memory_space<vmem>>, vector<16x128xf32>,
    %c1_i32 = arith.constant 1 : i32
    %19 = arith.cmpi eq, %arg1, %c1_i32 : i32
    %20 = arith.extui %19 : i1 to i32
    %c0_i32_16 = arith.constant 0 : i32
    %21 = arith.cmpi ne, %20, %c0_i32_16 : i32
    scf.if %21 {
      %c0_17 = arith.constant 0 : index
      %c0_18 = arith.constant 0 : index
      %22 = vector.load %arg6[%c0_17, %c0_18] : memref<16x128xf32, #tpu.memory_space<vmem>>, vector<16x128xf32>
      %c0_19 = arith.constant 0 : index
      %c0_20 = arith.constant 0 : index
      %23 = vector.load %arg5[%c0_19, %c0_20] : memref<16x128xf32, #tpu.memory_space<vmem>>, vector<16x128xf32>
      tpu.vector_store %arg5[%c0_19, %c0_20], %22 {strides = array<i32>} : memref<16x128xf32, #tpu.memory_space<vmem>>, vector<16x128xf32>,
    } else {
    }
    return
  }
  func.func @transform_0(%arg0: i32, %arg1: i32) -> (i32, i32) {
    %c0_i32 = arith.constant 0 : i32
    %c0_i32_0 = arith.constant 0 : i32
    return %arg0, %c0_i32 : i32, i32
  }
  func.func @transform_1(%arg0: i32, %arg1: i32) -> (i32, i32) {
    %c0_i32 = arith.constant 0 : i32
    %c0_i32_0 = arith.constant 0 : i32
    return %c0_i32, %arg1 : i32, i32
  }
  func.func @transform_2(%arg0: i32, %arg1: i32) -> (i32, i32, i32) {
    %c0_i32 = arith.constant 0 : i32
    %c0_i32_0 = arith.constant 0 : i32
    %c0_i32_1 = arith.constant 0 : i32
    return %c0_i32, %arg1, %c0_i32_0 : i32, i32, i32
  }
  func.func @transform_3(%arg0: i32, %arg1: i32) -> (i32, i32) {
    %c0_i32 = arith.constant 0 : i32
    %c0_i32_0 = arith.constant 0 : i32
    return %arg0, %c0_i32 : i32, i32
  }
}

</mosaic_0001>

<llo_original>
// kernel: tpu_custom_call.1
$region0: #{tpu_custom_call.1}
  #allocation0 [shape = 'u32[]', space=smem, size = 0x4, offset = 0x4, fixed_abs, tag = 'smem constant byte address 0x4 - core index']
  #allocation1 [shape = 'u32[144,128]{1,0:T(1,128)}', space=vmem, size = 0x12000, scoped, tag = 'internal scratch']
  #allocation2 [shape = 'f32[16,128]{1,0:T(8,128)}', space=vmem, size = 0x2000, scoped, tag = 'scratch operand']
  #allocation10 [shape = 's32[]', space=sflag, size = 0x4, offset = 0, fixed_abs, tag = 'sflag constant byte address 0x0 - dummy sync flag']
  %s0 = inlined_call_operand.hbm [shape: f32[18,128], index: 0, kind: input, shape index: {}]
  %s1 = inlined_call_operand.hbm [shape: f32[128,512], index: 1, kind: input, shape index: {}]
  %s2 = inlined_call_operand.hbm [shape: f32[2,512,128], index: 2, kind: input, shape index: {}]
  %s3 = inlined_call_operand.hbm [shape: f32[18,128], index: 3, kind: output, shape index: {}]
  %s4 = sld [smem:[#allocation0]]
  $region65: #{tpu_custom_call.1} parent=0
    _
  %s6 = ssub.s32 1, %s4
  %s7 = scalar_select 0, %s6, %s4
  $region1: #{tpu_custom_call.1} parent=0
    #allocation3 [shape = 'u8[16384]{0}', space=vmem, size = 0x4000, scoped, tag = 'input window, operand 0']
    #allocation4 [shape = 's32[2]{0}', space=sflag, size = 0x8, scoped, tag = 'scoped memory for tpu_custom_call.1']
    #allocation5 [shape = 's32[2]{0}', space=sflag, size = 0x8, scoped, tag = 'scoped memory for tpu_custom_call.1']
    #allocation6 [shape = 'u8[262144]{0}', space=vmem, size = 0x40000, scoped, tag = 'input window, operand 1']
    #allocation7 [shape = 's32[2]{0}', space=sflag, size = 0x8, scoped, tag = 'scoped memory for tpu_custom_call.1']
    #allocation8 [shape = 'u8[524288]{0}', space=vmem, size = 0x80000, scoped, tag = 'input window, operand 2']
    #allocation9 [shape = 'u8[16384]{0}', space=vmem, size = 0x4000, scoped, tag = 'output window, operand 0']
    %8 = vsyncpa [#allocation4], 0
    %s9 = scalar_lea.sflag [#allocation4], 1
    %10 = vsyncpa %s9, 0
    %11 = vsyncpa [#allocation7], 0
    %s12 = scalar_lea.sflag [#allocation7], 1
    %13 = vsyncpa %s12, 0
    %14 = vsyncpa [#allocation5], 0
    %s15 = scalar_lea.sflag [#allocation5], 1
    %16 = vsyncpa %s15, 0
    loop: start=0, step=1, limit=6
    $region2: #{tpu_custom_call.1} parent=1 // loop_pre_header
      _
    $region3: #{tpu_custom_call.1} parent=1 // loop_header
      %s18 = sphi 0, %s22
      %p19 = scmp.ge.s32.totalorder %s18, 6
      %s25 = sphi 0, %s37
      %s26 = sphi 0, %s33
      %s27 = sphi 0, %s25
      %s28 = sphi 0, %s26
      %s29 = sphi 0, %s27
      %s30 = sphi 0, %s28
      %s40 = sphi 0, %s42
      %s43 = sphi 0, %s40
      %s44 = sphi 0, %s43
      %s60 = sphi 0, %s44
      %s66 = sphi 0, %s68
      %s69 = sphi 0, %s66
      %s70 = sphi 0, %s69
      %s86 = sphi 0, %s70
      %s92 = sphi 0, %s94
      %s95 = sphi 0, %s92
      %s96 = sphi 0, %s95
      %s112 = sphi 0, %s96
      %s118 = sphi 0, %s120
      %s121 = sphi 0, %s118
      %s122 = sphi 0, %s121
      %s138 = sphi 0, %s122
    $region4: #{tpu_custom_call.1} parent=1 // loop_header_branch
      %21 = sbr.rel (%p19) target = $region8
    $region5: #{tpu_custom_call.1} parent=1 // loop_body
      %s23 = ssub.s32 %s18, 1
      %s24 = ssub.s32 %s18, 2
      %s31 = sadd.s32 1, %s26
      %p32 = scmp.ge.s32.totalorder %s31, 2
      %s33 = scalar_select %p32, 0, %s31
      %s34 = sadd.s32 1, %s25
      %s35 = scalar_select %p32, %s34, %s25
      %p36 = scmp.ge.s32.totalorder %s35, 2
      %s37 = scalar_select %p36, 0, %s35
      %s38 = ssub.s32 %s25, %s37
      %p39 = scmp.eq.s32.totalorder %s38, 0
      %s41 = sadd.s32 %s40, 1
      %s42 = scalar_select %p39, %s40, %s41
      %p45 = pneg %p39
      %p46 = scmp.eq.s32.totalorder %s18, 3
      %p47 = por %p45, %p46
      %p48 = scmp.ne.s32.totalorder %s40, %s43
      %p49 = scmp.eq.s32.totalorder %s18, 0
      %p50 = por %p48, %p49
      %p51 = scmp.ne.s32.totalorder %s40, %s43
      %p52 = scmp.eq.s32.totalorder %s23, 3
      %p53 = por %p51, %p52
      %p54 = scmp.ne.s32.totalorder %s43, %s44
      %p55 = scmp.eq.s32.totalorder %s23, 0
      %p56 = por %p54, %p55
      %p57 = scmp.ne.s32.totalorder %s43, %s44
      %p58 = scmp.eq.s32.totalorder %s24, 3
      %p59 = por %p57, %p58
      %p61 = scmp.ne.s32.totalorder %s44, %s60
      %p62 = scmp.eq.s32.totalorder %s24, 0
      %p63 = por %p61, %p62
      %s64 = ssub.s32 %s26, %s33
      %p65 = scmp.eq.s32.totalorder %s64, 0
      %s67 = sadd.s32 %s66, 1
      %s68 = scalar_select %p65, %s66, %s67
      %p71 = pneg %p65
      %p72 = scmp.eq.s32.totalorder %s18, 3
      %p73 = por %p71, %p72
      %p74 = scmp.ne.s32.totalorder %s66, %s69
      %p75 = scmp.eq.s32.totalorder %s18, 0
      %p76 = por %p74, %p75
      %p77 = scmp.ne.s32.totalorder %s66, %s69
      %p78 = scmp.eq.s32.totalorder %s23, 3
      %p79 = por %p77, %p78
      %p80 = scmp.ne.s32.totalorder %s69, %s70
      %p81 = scmp.eq.s32.totalorder %s23, 0
      %p82 = por %p80, %p81
      %p83 = scmp.ne.s32.totalorder %s69, %s70
      %p84 = scmp.eq.s32.totalorder %s24, 3
      %p85 = por %p83, %p84
      %p87 = scmp.ne.s32.totalorder %s70, %s86
      %p88 = scmp.eq.s32.totalorder %s24, 0
      %p89 = por %p87, %p88
      %s90 = ssub.s32 %s26, %s33
      %p91 = scmp.eq.s32.totalorder %s90, 0
      %s93 = sadd.s32 %s92, 1
      %s94 = scalar_select %p91, %s92, %s93
      %p97 = pneg %p91
      %p98 = scmp.eq.s32.totalorder %s18, 3
      %p99 = por %p97, %p98
      %p100 = scmp.ne.s32.totalorder %s92, %s95
      %p101 = scmp.eq.s32.totalorder %s18, 0
      %p102 = por %p100, %p101
      %p103 = scmp.ne.s32.totalorder %s92, %s95
      %p104 = scmp.eq.s32.totalorder %s23, 3
      %p105 = por %p103, %p104
      %p106 = scmp.ne.s32.totalorder %s95, %s96
      %p107 = scmp.eq.s32.totalorder %s23, 0
      %p108 = por %p106, %p107
      %p109 = scmp.ne.s32.totalorder %s95, %s96
      %p110 = scmp.eq.s32.totalorder %s24, 3
      %p111 = por %p109, %p110
      %p113 = scmp.ne.s32.totalorder %s96, %s112
      %p114 = scmp.eq.s32.totalorder %s24, 0
      %p115 = por %p113, %p114
      %s116 = ssub.s32 %s25, %s37
      %p117 = scmp.eq.s32.totalorder %s116, 0
      %s119 = sadd.s32 %s118, 1
      %s120 = scalar_select %p117, %s118, %s119
      %p123 = pneg %p117
      %p124 = scmp.eq.s32.totalorder %s18, 3
      %p125 = por %p123, %p124
      %p126 = scmp.ne.s32.totalorder %s118, %s121
      %p127 = scmp.eq.s32.totalorder %s18, 0
      %p128 = por %p126, %p127
      %p129 = scmp.ne.s32.totalorder %s118, %s121
      %p130 = scmp.eq.s32.totalorder %s23, 3
      %p131 = por %p129, %p130
      %p132 = scmp.ne.s32.totalorder %s121, %s122
      %p133 = scmp.eq.s32.totalorder %s23, 0
      %p134 = por %p132, %p133
      %p135 = scmp.ne.s32.totalorder %s121, %s122
      %p136 = scmp.eq.s32.totalorder %s24, 3
      %p137 = por %p135, %p136
      %p139 = scmp.ne.s32.totalorder %s122, %s138
      %p140 = scmp.eq.s32.totalorder %s24, 0
      %p141 = por %p139, %p140
      %p142 = scmp.le.s32.totalorder 1, %s18
      %p143 = scmp.lt.s32.totalorder %s18, 5
      %p144 = pnand %p142, %p143
      %p145 = pneg %p144
      // Predicated region
      $region9: #{tpu_custom_call.1} parent=5 // pred_check
        _
      $region10: #{tpu_custom_call.1} parent=5 // pred_check_branch
        %147 = sbr.rel (%p144) target = $region12
      $region11: #{tpu_custom_call.1} parent=5 // pred_region
        %s148 = ssub.s32 %s18, 1
      $region12: #{tpu_custom_call.1} parent=5 // pred_fallthru
        _
      %p149 = scmp.lt.s32.totalorder %s18, 4
      // Predicated region
      $region13: #{tpu_custom_call.1} parent=5 // pred_check
        %p150 = pneg %p149
      $region14: #{tpu_custom_call.1} parent=5 // pred_check_branch
        %152 = sbr.rel (%p150) target = $region16
      $region15: #{tpu_custom_call.1} parent=5 // pred_region
        // Predicated region
        $region17: #{tpu_custom_call.1} parent=15 // pred_check
          %p153 = pneg %p50
        $region18: #{tpu_custom_call.1} parent=15 // pred_check_branch
          %155 = sbr.rel (%p153) target = $region20
        $region19: #{tpu_custom_call.1} parent=15 // pred_region
          %s156 = sand.u32 %s40, 1
          %s157 = scalar_lea.sflag [#allocation4], %s156
          %s158 = sand.u32 %s40, 1
          %s159 = smul.addr %s158, 16
          %s160 = scalar_lea.vmem [#allocation3], %s159
          %s161 = smul.u32 2, %s25
          %s162 = ssub.s32 3, %s161
          %p163 = scmp.lt.s32.totalorder %s162, 2
          %s164 = scalar_select %p163, %s162, 2
          %s165 = smul.u32 128, %s164
          %s167 = ssub.s32 256, %s165
          %168 = vsyncadd %s157, %s167
          %p169 = scmp.ne.s32.totalorder 0, %s165
          %s170 = smul.addr %s161, 128
          %s171 = scalar_lea.hbm %s0, %s170
          %s172 = smul.u32 8, %s164
          %s173 = sshll.u32 %s160, 4
          %s174 = int_to_ptr.vmem [resolvable:$true] %s173
          %s175 = sshll.u32 %s172, 4
          %179 = dma.hbm_to_vmem [thread:$0]  (%p169), %s171, %s175, %s174, %s157, 128, 128, 8
        $region20: #{tpu_custom_call.1} parent=15 // pred_fallthru
          _
        // Predicated region
        $region21: #{tpu_custom_call.1} parent=15 // pred_check
          %p180 = pneg %p76
        $region22: #{tpu_custom_call.1} parent=15 // pred_check_branch
          %182 = sbr.rel (%p180) target = $region24
        $region23: #{tpu_custom_call.1} parent=15 // pred_region
          %s183 = sand.u32 %s18, 1
          %s184 = scalar_lea.sflag [#allocation7], %s183
          %s185 = sand.u32 %s66, 1
          %s186 = smul.addr %s185, 256
          %s187 = scalar_lea.vmem [#allocation6], %s186
          %s188 = smul.u32 2, %s26
          %s190 = ssub.s32 4096, 4096
          %191 = vsyncadd %s184, %s190
          %s192 = smul.addr %s188, 128
          %s193 = scalar_lea.hbm %s1, %s192
          %s194 = sshll.u32 %s187, 4
          %s195 = int_to_ptr.vmem [resolvable:$true] %s194
          %200 = dma.hbm_to_vmem [thread:$0]  %s193, 4096, %s195, %s184, 512, 256, 16
        $region24: #{tpu_custom_call.1} parent=15 // pred_fallthru
          _
        // Predicated region
        $region25: #{tpu_custom_call.1} parent=15 // pred_check
          %p201 = pneg %p102
        $region26: #{tpu_custom_call.1} parent=15 // pred_check_branch
          %203 = sbr.rel (%p201) target = $region28
        $region27: #{tpu_custom_call.1} parent=15 // pred_region
          #allocation11 [shape = 'u32[6]{0}', space=smem, size = 0x18, scoped, tag = 'DMA stride descriptor']
          %s204 = sand.u32 %s18, 1
          %s205 = scalar_lea.sflag [#allocation7], %s204
          %s206 = sand.u32 %s92, 1
          %s207 = smul.addr %s206, 512
          %s208 = scalar_lea.vmem [#allocation8], %s207
          %s209 = smul.u32 32, %s26
          %s211 = ssub.s32 8192, 8192
          %212 = vsyncadd %s205, %s211
          %s213 = smul.addr %s209, 128
          %s214 = scalar_lea.hbm %s2, %s213
          %s216 = sshll.u32 1, 14
          %s217 = sxor.u32 4294967295, %s216
          %s219 = sld [smem:[#allocation0]]
          %s220 = sadd.s32 2, %s219
          %s222 = sshll.u32 7, 26
          %s223 = sxor.u32 4294967295, %s222
          %s224 = sand.u32 0, %s223
          %s225 = sshll.u32 %s220, 26
          %s226 = sor.u32 %s224, %s225
          %s227 = sshll.u32 %s208, 4
          %s228 = int_to_ptr.vmem [resolvable:$true] %s227
          %234 = sst [smem:[#allocation11]] 8192
          %s235 = scalar_lea.smem [#allocation11], 1
          %236 = sst [smem:[%s235]] 4096
          %s237 = scalar_lea.smem [#allocation11], 2
          %238 = sst [smem:[%s237]] 32
          %s239 = scalar_lea.smem [#allocation11], 3
          %240 = sst [smem:[%s239]] 128
          %s241 = scalar_lea.smem [#allocation11], 4
          %242 = sst [smem:[%s241]] 128
          %s243 = scalar_lea.smem [#allocation11], 5
          %244 = sst [smem:[%s243]] 8
          %246 = dma.general %s214, 8192, %s228, %s205, 131072, [#allocation11], %s226, 0
        $region28: #{tpu_custom_call.1} parent=15 // pred_fallthru
          _
      $region16: #{tpu_custom_call.1} parent=5 // pred_fallthru
        _
      %p247 = scmp.le.s32.totalorder 1, %s18
      %p248 = scmp.lt.s32.totalorder %s18, 5
      %p249 = pnand %p247, %p248
      %p250 = pneg %p249
      // Predicated region
      $region29: #{tpu_custom_call.1} parent=5 // pred_check
        _
      $region30: #{tpu_custom_call.1} parent=5 // pred_check_branch
        %252 = sbr.rel (%p249) target = $region32
      $region31: #{tpu_custom_call.1} parent=5 // pred_region
        %s253 = ssub.s32 %s18, 1
        %s254 = sand.u32 %s43, 1
        %s255 = scalar_lea.sflag [#allocation4], %s254
        %s256 = sand.u32 %s43, 1
        %s257 = smul.addr %s256, 16
        %s258 = scalar_lea.vmem [#allocation3], %s257
        // Predicated region
        $region33: #{tpu_custom_call.1} parent=31 // pred_check
          %p259 = pneg %p56
        $region34: #{tpu_custom_call.1} parent=31 // pred_check_branch
          %261 = sbr.rel (%p259) target = $region36
        $region35: #{tpu_custom_call.1} parent=31 // pred_region
          %262 = dma.done %s255, 256
        $region36: #{tpu_custom_call.1} parent=31 // pred_fallthru
          _
        %s263 = sand.u32 %s23, 1
        %s264 = scalar_lea.sflag [#allocation7], %s263
        %s265 = sand.u32 %s69, 1
        %s266 = smul.addr %s265, 256
        %s267 = scalar_lea.vmem [#allocation6], %s266
        // Predicated region
        $region37: #{tpu_custom_call.1} parent=31 // pred_check
          %p268 = pneg %p82
        $region38: #{tpu_custom_call.1} parent=31 // pred_check_branch
          %270 = sbr.rel (%p268) target = $region40
        $region39: #{tpu_custom_call.1} parent=31 // pred_region
          %271 = dma.done %s264, 4096
        $region40: #{tpu_custom_call.1} parent=31 // pred_fallthru
          _
        %s272 = sand.u32 %s23, 1
        %s273 = scalar_lea.sflag [#allocation7], %s272
        %s274 = sand.u32 %s95, 1
        %s275 = smul.addr %s274, 512
        %s276 = scalar_lea.vmem [#allocation8], %s275
        // Predicated region
        $region41: #{tpu_custom_call.1} parent=31 // pred_check
          %p277 = pneg %p108
        $region42: #{tpu_custom_call.1} parent=31 // pred_check_branch
          %279 = sbr.rel (%p277) target = $region44
        $region43: #{tpu_custom_call.1} parent=31 // pred_region
          %280 = dma.done %s273, 8192
        $region44: #{tpu_custom_call.1} parent=31 // pred_fallthru
          _
        %s281 = sand.u32 %s43, 1
        %s282 = scalar_lea.sflag [#allocation4], %s281
        %s283 = sand.u32 %s43, 1
        %s284 = smul.addr %s283, 16
        %s285 = scalar_lea.vmem [#allocation3], %s284
        %p286 = pneg %p56
        %p287 = pneg %p53
        %s288 = sand.u32 %s23, 1
        %s289 = scalar_lea.sflag [#allocation7], %s288
        %s290 = sand.u32 %s69, 1
        %s291 = smul.addr %s290, 256
        %s292 = scalar_lea.vmem [#allocation6], %s291
        %p293 = pneg %p82
        %p294 = pneg %p79
        %s295 = sand.u32 %s23, 1
        %s296 = scalar_lea.sflag [#allocation7], %s295
        %s297 = sand.u32 %s95, 1
        %s298 = smul.addr %s297, 512
        %s299 = scalar_lea.vmem [#allocation8], %s298
        %p300 = pneg %p108
        %p301 = pneg %p105
        %p302 = pneg %p134
        %p303 = pneg %p131
        %s304 = sand.u32 %s121, 1
        %s305 = scalar_lea.sflag [#allocation5], %s304
        %s306 = sand.u32 %s121, 1
        %s307 = smul.addr %s306, 16
        %s308 = scalar_lea.vmem [#allocation9], %s307
        %s309 = smul.u32 2, %s27
        %s310 = ssub.s32 3, %s309
        %p311 = scmp.lt.s32.totalorder %s310, 2
        %s312 = scalar_select %p311, %s310, 2
        %s313 = smul.u32 128, %s312
        %s314 = smul.u32 2, %s28
        %s315 = smul.u32 32, %s28
        %s316 = smul.u32 2, %s27
        %s317 = ssub.s32 3, %s316
        %p318 = scmp.lt.s32.totalorder %s317, 2
        %s319 = scalar_select %p318, %s317, 2
        %s320 = smul.u32 128, %s319
        %p321 = scmp.eq.s32.totalorder %s28, 0
        // Predicated region
        $region45: #{tpu_custom_call.1} parent=31 // pred_check
          %p322 = pneg %p321
        $region46: #{tpu_custom_call.1} parent=31 // pred_check_branch
          %324 = sbr.rel (%p322) target = $region48
        $region47: #{tpu_custom_call.1} parent=31 // pred_region
          %325 = vst [vmem:[#allocation2] sm:$0xff] 0.0
          %326 = vst [vmem:[#allocation2 + $0x8] sm:$0xff] 0.0
        $region48: #{tpu_custom_call.1} parent=31 // pred_fallthru
          _
        %v327 = vld [vmem:[%s258] sm:$0xff]
        %v328 = vld [vmem:[%s258 + $0x8] sm:$0xff]
        %v329 = vld [vmem:[%s267] sm:$0xff]
        %v330 = vld [vmem:[%s267 + $0x8] sm:$0xff]
        %v331 = vld [vmem:[%s267 + $0x10] sm:$0xff]
        %v332 = vld [vmem:[%s267 + $0x18] sm:$0xff]
        %v333 = vld [vmem:[%s267 + $0x20] sm:$0xff]
        %v334 = vld [vmem:[%s267 + $0x28] sm:$0xff]
        %v335 = vld [vmem:[%s267 + $0x30] sm:$0xff]
        %v336 = vld [vmem:[%s267 + $0x38] sm:$0xff]
        %v337 = vld [vmem:[%s267 + $0x40] sm:$0xff]
        %v338 = vld [vmem:[%s267 + $0x48] sm:$0xff]
        %v339 = vld [vmem:[%s267 + $0x50] sm:$0xff]
        %v340 = vld [vmem:[%s267 + $0x58] sm:$0xff]
        %v341 = vld [vmem:[%s267 + $0x60] sm:$0xff]
        %v342 = vld [vmem:[%s267 + $0x68] sm:$0xff]
        %v343 = vld [vmem:[%s267 + $0x70] sm:$0xff]
        %v344 = vld [vmem:[%s267 + $0x78] sm:$0xff]
        %v345 = vld [vmem:[%s267 + $0x80] sm:$0xff]
        %v346 = vld [vmem:[%s267 + $0x88] sm:$0xff]
        %v347 = vld [vmem:[%s267 + $0x90] sm:$0xff]
        %v348 = vld [vmem:[%s267 + $0x98] sm:$0xff]
        %v349 = vld [vmem:[%s267 + $0xa0] sm:$0xff]
        %v350 = vld [vmem:[%s267 + $0xa8] sm:$0xff]
        %v351 = vld [vmem:[%s267 + $0xb0] sm:$0xff]
        %v352 = vld [vmem:[%s267 + $0xb8] sm:$0xff]
        %v353 = vld [vmem:[%s267 + $0xc0] sm:$0xff]
        %v354 = vld [vmem:[%s267 + $0xc8] sm:$0xff]
        %v355 = vld [vmem:[%s267 + $0xd0] sm:$0xff]
        %v356 = vld [vmem:[%s267 + $0xd8] sm:$0xff]
        %v357 = vld [vmem:[%s267 + $0xe0] sm:$0xff]
        %v358 = vld [vmem:[%s267 + $0xe8] sm:$0xff]
        %v359 = vld [vmem:[%s267 + $0xf0] sm:$0xff]
        %v360 = vld [vmem:[%s267 + $0xf8] sm:$0xff]
        %361 = vmatprep.subr.mxu0 %v360
        %362 = vmatpush1.msra.mxu0 %v359
        %363 = vmatprep.subr.mxu0 %v358
        %364 = vmatpush1.msra.mxu0 %v357
        %365 = vmatprep.subr.mxu0 %v356
        %366 = vmatpush1.msra.mxu0 %v355
        %367 = vmatprep.subr.mxu0 %v354
        %368 = vmatpush1.msra.mxu0 %v353
        %369 = vmatprep.subr.mxu0 %v352
        %370 = vmatpush1.msra.mxu0 %v351
        %371 = vmatprep.subr.mxu0 %v350
        %372 = vmatpush1.msra.mxu0 %v349
        %373 = vmatprep.subr.mxu0 %v348
        %374 = vmatpush1.msra.mxu0 %v347
        %375 = vmatprep.subr.mxu0 %v346
        %376 = vmatpush1.msra.mxu0 %v345
        %377 = vmatprep.subr.mxu0 %v344
        %378 = vmatpush1.msra.mxu0 %v343
        %379 = vmatprep.subr.mxu0 %v342
        %380 = vmatpush1.msra.mxu0 %v341
        %381 = vmatprep.subr.mxu0 %v340
        %382 = vmatpush1.msra.mxu0 %v339
        %383 = vmatprep.subr.mxu0 %v338
        %384 = vmatpush1.msra.mxu0 %v337
        %385 = vmatprep.subr.mxu0 %v336
        %386 = vmatpush1.msra.mxu0 %v335
        %387 = vmatprep.subr.mxu0 %v334
        %388 = vmatpush1.msra.mxu0 %v333
        %389 = vmatprep.subr.mxu0 %v332
        %390 = vmatpush1.msra.mxu0 %v331
        %391 = vmatprep.subr.mxu0 %v330
        %392 = vmatpush1.msra.mxu0 %v329
        %393 = vmatprep.subr.mxu0 0.0
        %394 = vmatpush2.msra.mxu0 0.0
        %395 = vmatprep.subr.mxu0 0.0
        %396 = vmatpush2.msra.mxu0 0.0
        %397 = vmatprep.subr.mxu0 0.0
        %398 = vmatpush2.msra.mxu0 0.0
        %399 = vmatprep.subr.mxu0 0.0
        %400 = vmatpush2.msra.mxu0 0.0
        %401 = vmatprep.subr.mxu0 0.0
        %402 = vmatpush2.msra.mxu0 0.0
        %403 = vmatprep.subr.mxu0 0.0
        %404 = vmatpush2.msra.mxu0 0.0
        %405 = vmatprep.subr.mxu0 0.0
        %406 = vmatpush2.msra.mxu0 0.0
        %407 = vmatprep.subr.mxu0 0.0
        %408 = vmatpush2.msra.mxu0 0.0
        %409 = vmatprep.subr.mxu0 0.0
        %410 = vmatpush2.msra.mxu0 0.0
        %411 = vmatprep.subr.mxu0 0.0
        %412 = vmatpush2.msra.mxu0 0.0
        %413 = vmatprep.subr.mxu0 0.0
        %414 = vmatpush2.msra.mxu0 0.0
        %415 = vmatprep.subr.mxu0 0.0
        %416 = vmatpush2.msra.mxu0 0.0
        %417 = vmatprep.subr.mxu0 0.0
        %418 = vmatpush2.msra.mxu0 0.0
        %419 = vmatprep.subr.mxu0 0.0
        %420 = vmatpush2.msra.mxu0 0.0
        %421 = vmatprep.subr.mxu0 0.0
        %422 = vmatpush2.msra.mxu0 0.0
        %423 = vmatprep.subr.mxu0 0.0
        %424 = vmatpush2.msra.mxu0 0.0
        %425 = vmatprep.mubr.f32.mxu0 0.0
        %426 = vmatmul.mubr.f32.gmra.mxu0 %v327
        %v427 = vpop.f32.mrf.mxu0
        %v428 = vadd.f32 0.0, %v427
        %v429 = vpop.f32.mrf.mxu0
        %v430 = vadd.f32 0.0, %v429
        %431 = vmatprep.mubr.f32.mxu0 0.0
        %432 = vmatmul.mubr.f32.gmra.mxu0 %v328
        %v433 = vpop.f32.mrf.mxu0
        %v434 = vadd.f32 0.0, %v433
        %v435 = vpop.f32.mrf.mxu0
        %v436 = vadd.f32 0.0, %v435
        %437 = vdwg.mxu0
        %v438 = vmax.f32 %v428, 0.0
        %v439 = vmax.f32 %v430, 0.0
        %v440 = vmax.f32 %v434, 0.0
        %v441 = vmax.f32 %v436, 0.0
        %v442 = vsub.f32 %v438, %v428
        %v443 = vsub.f32 %v439, %v430
        %v444 = vsub.f32 %v440, %v434
        %v445 = vsub.f32 %v441, %v436
        %v446 = vld [vmem:[#allocation2] sm:$0xff]
        %v447 = vld [vmem:[#allocation2 + $0x8] sm:$0xff]
        %v448 = vld [vmem:[%s276] sm:$0xff]
        %v449 = vld [vmem:[%s276 + $0x8] sm:$0xff]
        %v450 = vld [vmem:[%s276 + $0x10] sm:$0xff]
        %v451 = vld [vmem:[%s276 + $0x18] sm:$0xff]
        %v452 = vld [vmem:[%s276 + $0x20] sm:$0xff]
        %v453 = vld [vmem:[%s276 + $0x28] sm:$0xff]
        %v454 = vld [vmem:[%s276 + $0x30] sm:$0xff]
        %v455 = vld [vmem:[%s276 + $0x38] sm:$0xff]
        %v456 = vld [vmem:[%s276 + $0x40] sm:$0xff]
        %v457 = vld [vmem:[%s276 + $0x48] sm:$0xff]
        %v458 = vld [vmem:[%s276 + $0x50] sm:$0xff]
        %v459 = vld [vmem:[%s276 + $0x58] sm:$0xff]
        %v460 = vld [vmem:[%s276 + $0x60] sm:$0xff]
        %v461 = vld [vmem:[%s276 + $0x68] sm:$0xff]
        %v462 = vld [vmem:[%s276 + $0x70] sm:$0xff]
        %v463 = vld [vmem:[%s276 + $0x78] sm:$0xff]
        %v464 = vld [vmem:[%s276 + $0x80] sm:$0xff]
        %v465 = vld [vmem:[%s276 + $0x88] sm:$0xff]
        %v466 = vld [vmem:[%s276 + $0x90] sm:$0xff]
        %v467 = vld [vmem:[%s276 + $0x98] sm:$0xff]
        %v468 = vld [vmem:[%s276 + $0xa0] sm:$0xff]
        %v469 = vld [vmem:[%s276 + $0xa8] sm:$0xff]
        %v470 = vld [vmem:[%s276 + $0xb0] sm:$0xff]
        %v471 = vld [vmem:[%s276 + $0xb8] sm:$0xff]
        %v472 = vld [vmem:[%s276 + $0xc0] sm:$0xff]
        %v473 = vld [vmem:[%s276 + $0xc8] sm:$0xff]
        %v474 = vld [vmem:[%s276 + $0xd0] sm:$0xff]
        %v475 = vld [vmem:[%s276 + $0xd8] sm:$0xff]
        %v476 = vld [vmem:[%s276 + $0xe0] sm:$0xff]
        %v477 = vld [vmem:[%s276 + $0xe8] sm:$0xff]
        %v478 = vld [vmem:[%s276 + $0xf0] sm:$0xff]
        %v479 = vld [vmem:[%s276 + $0xf8] sm:$0xff]
        %s480 = scalar_lea.vmem %s276, 256 [#allocation8]
        %v481 = vld [vmem:[%s480] sm:$0xff]
        %v482 = vld [vmem:[%s480 + $0x8] sm:$0xff]
        %v483 = vld [vmem:[%s480 + $0x10] sm:$0xff]
        %v484 = vld [vmem:[%s480 + $0x18] sm:$0xff]
        %v485 = vld [vmem:[%s480 + $0x20] sm:$0xff]
        %v486 = vld [vmem:[%s480 + $0x28] sm:$0xff]
        %v487 = vld [vmem:[%s480 + $0x30] sm:$0xff]
        %v488 = vld [vmem:[%s480 + $0x38] sm:$0xff]
        %v489 = vld [vmem:[%s480 + $0x40] sm:$0xff]
        %v490 = vld [vmem:[%s480 + $0x48] sm:$0xff]
        %v491 = vld [vmem:[%s480 + $0x50] sm:$0xff]
        %v492 = vld [vmem:[%s480 + $0x58] sm:$0xff]
        %v493 = vld [vmem:[%s480 + $0x60] sm:$0xff]
        %v494 = vld [vmem:[%s480 + $0x68] sm:$0xff]
        %v495 = vld [vmem:[%s480 + $0x70] sm:$0xff]
        %v496 = vld [vmem:[%s480 + $0x78] sm:$0xff]
        %v497 = vld [vmem:[%s480 + $0x80] sm:$0xff]
        %v498 = vld [vmem:[%s480 + $0x88] sm:$0xff]
        %v499 = vld [vmem:[%s480 + $0x90] sm:$0xff]
        %v500 = vld [vmem:[%s480 + $0x98] sm:$0xff]
        %v501 = vld [vmem:[%s480 + $0xa0] sm:$0xff]
        %v502 = vld [vmem:[%s480 + $0xa8] sm:$0xff]
        %v503 = vld [vmem:[%s480 + $0xb0] sm:$0xff]
        %v504 = vld [vmem:[%s480 + $0xb8] sm:$0xff]
        %v505 = vld [vmem:[%s480 + $0xc0] sm:$0xff]
        %v506 = vld [vmem:[%s480 + $0xc8] sm:$0xff]
        %v507 = vld [vmem:[%s480 + $0xd0] sm:$0xff]
        %v508 = vld [vmem:[%s480 + $0xd8] sm:$0xff]
        %v509 = vld [vmem:[%s480 + $0xe0] sm:$0xff]
        %v510 = vld [vmem:[%s480 + $0xe8] sm:$0xff]
        %v511 = vld [vmem:[%s480 + $0xf0] sm:$0xff]
        %v512 = vld [vmem:[%s480 + $0xf8] sm:$0xff]
        %513 = vmatprep.subr.mxu0 0.0
        %514 = vmatpush1.msra.mxu0 %v496
        %515 = vmatprep.subr.mxu0 0.0
        %516 = vmatpush1.msra.mxu0 %v495
        %517 = vmatprep.subr.mxu0 0.0
        %518 = vmatpush1.msra.mxu0 %v494
        %519 = vmatprep.subr.mxu0 0.0
        %520 = vmatpush1.msra.mxu0 %v493
        %521 = vmatprep.subr.mxu0 0.0
        %522 = vmatpush1.msra.mxu0 %v492
        %523 = vmatprep.subr.mxu0 0.0
        %524 = vmatpush1.msra.mxu0 %v491
        %525 = vmatprep.subr.mxu0 0.0
        %526 = vmatpush1.msra.mxu0 %v490
        %527 = vmatprep.subr.mxu0 0.0
        %528 = vmatpush1.msra.mxu0 %v489
        %529 = vmatprep.subr.mxu0 0.0
        %530 = vmatpush1.msra.mxu0 %v488
        %531 = vmatprep.subr.mxu0 0.0
        %532 = vmatpush1.msra.mxu0 %v487
        %533 = vmatprep.subr.mxu0 0.0
        %534 = vmatpush1.msra.mxu0 %v486
        %535 = vmatprep.subr.mxu0 0.0
        %536 = vmatpush1.msra.mxu0 %v485
        %537 = vmatprep.subr.mxu0 0.0
        %538 = vmatpush1.msra.mxu0 %v484
        %539 = vmatprep.subr.mxu0 0.0
        %540 = vmatpush1.msra.mxu0 %v483
        %541 = vmatprep.subr.mxu0 0.0
        %542 = vmatpush1.msra.mxu0 %v482
        %543 = vmatprep.subr.mxu0 0.0
        %544 = vmatpush1.msra.mxu0 %v481
        %545 = vmatprep.subr.mxu0 0.0
        %546 = vmatpush2.msra.mxu0 %v512
        %547 = vmatprep.subr.mxu0 0.0
        %548 = vmatpush2.msra.mxu0 %v511
        %549 = vmatprep.subr.mxu0 0.0
        %550 = vmatpush2.msra.mxu0 %v510
        %551 = vmatprep.subr.mxu0 0.0
        %552 = vmatpush2.msra.mxu0 %v509
        %553 = vmatprep.subr.mxu0 0.0
        %554 = vmatpush2.msra.mxu0 %v508
        %555 = vmatprep.subr.mxu0 0.0
        %556 = vmatpush2.msra.mxu0 %v507
        %557 = vmatprep.subr.mxu0 0.0
        %558 = vmatpush2.msra.mxu0 %v506
        %559 = vmatprep.subr.mxu0 0.0
        %560 = vmatpush2.msra.mxu0 %v505
        %561 = vmatprep.subr.mxu0 0.0
        %562 = vmatpush2.msra.mxu0 %v504
        %563 = vmatprep.subr.mxu0 0.0
        %564 = vmatpush2.msra.mxu0 %v503
        %565 = vmatprep.subr.mxu0 0.0
        %566 = vmatpush2.msra.mxu0 %v502
        %567 = vmatprep.subr.mxu0 0.0
        %568 = vmatpush2.msra.mxu0 %v501
        %569 = vmatprep.subr.mxu0 0.0
        %570 = vmatpush2.msra.mxu0 %v500
        %571 = vmatprep.subr.mxu0 0.0
        %572 = vmatpush2.msra.mxu0 %v499
        %573 = vmatprep.subr.mxu0 0.0
        %574 = vmatpush2.msra.mxu0 %v498
        %575 = vmatprep.subr.mxu0 0.0
        %576 = vmatpush2.msra.mxu0 %v497
        %577 = vmatprep.mubr.f32.mxu0 %v443
        %578 = vmatmul.mubr.f32.gmra.mxu0 %v442
        %v579 = vpop.f32.mrf.mxu0
        %v580 = vadd.f32 0.0, %v579
        %v581 = vpop.f32.mrf.mxu0
        %582 = vmatprep.mubr.f32.mxu0 %v445
        %583 = vmatmul.mubr.f32.gmra.mxu0 %v444
        %v584 = vpop.f32.mrf.mxu0
        %v585 = vadd.f32 0.0, %v584
        %v586 = vpop.f32.mrf.mxu0
        %587 = vdwg.mxu0
        %588 = vmatprep.subr.mxu0 0.0
        %589 = vmatpush1.msra.mxu0 %v463
        %590 = vmatprep.subr.mxu0 0.0
        %591 = vmatpush1.msra.mxu0 %v462
        %592 = vmatprep.subr.mxu0 0.0
        %593 = vmatpush1.msra.mxu0 %v461
        %594 = vmatprep.subr.mxu0 0.0
        %595 = vmatpush1.msra.mxu0 %v460
        %596 = vmatprep.subr.mxu0 0.0
        %597 = vmatpush1.msra.mxu0 %v459
        %598 = vmatprep.subr.mxu0 0.0
        %599 = vmatpush1.msra.mxu0 %v458
        %600 = vmatprep.subr.mxu0 0.0
        %601 = vmatpush1.msra.mxu0 %v457
        %602 = vmatprep.subr.mxu0 0.0
        %603 = vmatpush1.msra.mxu0 %v456
        %604 = vmatprep.subr.mxu0 0.0
        %605 = vmatpush1.msra.mxu0 %v455
        %606 = vmatprep.subr.mxu0 0.0
        %607 = vmatpush1.msra.mxu0 %v454
        %608 = vmatprep.subr.mxu0 0.0
        %609 = vmatpush1.msra.mxu0 %v453
        %610 = vmatprep.subr.mxu0 0.0
        %611 = vmatpush1.msra.mxu0 %v452
        %612 = vmatprep.subr.mxu0 0.0
        %613 = vmatpush1.msra.mxu0 %v451
        %614 = vmatprep.subr.mxu0 0.0
        %615 = vmatpush1.msra.mxu0 %v450
        %616 = vmatprep.subr.mxu0 0.0
        %617 = vmatpush1.msra.mxu0 %v449
        %618 = vmatprep.subr.mxu0 0.0
        %619 = vmatpush1.msra.mxu0 %v448
        %620 = vmatprep.subr.mxu0 0.0
        %621 = vmatpush2.msra.mxu0 %v479
        %622 = vmatprep.subr.mxu0 0.0
        %623 = vmatpush2.msra.mxu0 %v478
        %624 = vmatprep.subr.mxu0 0.0
        %625 = vmatpush2.msra.mxu0 %v477
        %626 = vmatprep.subr.mxu0 0.0
        %627 = vmatpush2.msra.mxu0 %v476
        %628 = vmatprep.subr.mxu0 0.0
        %629 = vmatpush2.msra.mxu0 %v475
        %630 = vmatprep.subr.mxu0 0.0
        %631 = vmatpush2.msra.mxu0 %v474
        %632 = vmatprep.subr.mxu0 0.0
        %633 = vmatpush2.msra.mxu0 %v473
        %634 = vmatprep.subr.mxu0 0.0
        %635 = vmatpush2.msra.mxu0 %v472
        %636 = vmatprep.subr.mxu0 0.0
        %637 = vmatpush2.msra.mxu0 %v471
        %638 = vmatprep.subr.mxu0 0.0
        %639 = vmatpush2.msra.mxu0 %v470
        %640 = vmatprep.subr.mxu0 0.0
        %641 = vmatpush2.msra.mxu0 %v469
        %642 = vmatprep.subr.mxu0 0.0
        %643 = vmatpush2.msra.mxu0 %v468
        %644 = vmatprep.subr.mxu0 0.0
        %645 = vmatpush2.msra.mxu0 %v467
        %646 = vmatprep.subr.mxu0 0.0
        %647 = vmatpush2.msra.mxu0 %v466
        %648 = vmatprep.subr.mxu0 0.0
        %649 = vmatpush2.msra.mxu0 %v465
        %650 = vmatprep.subr.mxu0 0.0
        %651 = vmatpush2.msra.mxu0 %v464
        %652 = vmatprep.mubr.f32.mxu0 %v439
        %653 = vmatmul.mubr.f32.gmra.mxu0 %v438
        %v654 = vpop.f32.mrf.mxu0
        %v655 = vadd.f32 %v580, %v654
        %v656 = vpop.f32.mrf.mxu0
        %657 = vmatprep.mubr.f32.mxu0 %v441
        %658 = vmatmul.mubr.f32.gmra.mxu0 %v440
        %v659 = vpop.f32.mrf.mxu0
        %v660 = vadd.f32 %v585, %v659
        %v661 = vpop.f32.mrf.mxu0
        %662 = vdwg.mxu0
        %v663 = vadd.f32 %v446, %v655
        %v664 = vadd.f32 %v447, %v660
        %665 = vst [vmem:[#allocation2] sm:$0xff] %v663
        %666 = vst [vmem:[#allocation2 + $0x8] sm:$0xff] %v664
        %p667 = scmp.eq.s32.totalorder %s28, 1
        // Predicated region
        $region49: #{tpu_custom_call.1} parent=31 // pred_check
          %p668 = pneg %p667
        $region50: #{tpu_custom_call.1} parent=31 // pred_check_branch
          %670 = sbr.rel (%p668) target = $region52
        $region51: #{tpu_custom_call.1} parent=31 // pred_region
          %v671 = vld [vmem:[#allocation2] sm:$0xff]
          %v672 = vld [vmem:[#allocation2 + $0x8] sm:$0xff]
          %673 = vst [vmem:[%s308] sm:$0xff] %v671
          %674 = vst [vmem:[%s308 + $0x8] sm:$0xff] %v672
        $region52: #{tpu_custom_call.1} parent=31 // pred_fallthru
          _
        %s675 = sand.u32 %s121, 1
        %s676 = scalar_lea.sflag [#allocation5], %s675
        %s677 = sand.u32 %s121, 1
        %s678 = smul.addr %s677, 16
        %s679 = scalar_lea.vmem [#allocation9], %s678
        // Predicated region
        $region53: #{tpu_custom_call.1} parent=31 // pred_check
          %p680 = pneg %p131
        $region54: #{tpu_custom_call.1} parent=31 // pred_check_branch
          %682 = sbr.rel (%p680) target = $region56
        $region55: #{tpu_custom_call.1} parent=31 // pred_region
          %s683 = smul.u32 2, %s27
          %s684 = ssub.s32 3, %s683
          %p685 = scmp.lt.s32.totalorder %s684, 2
          %s686 = scalar_select %p685, %s684, 2
          %s687 = smul.u32 128, %s686
          %s689 = ssub.s32 256, %s687
          %690 = vsyncadd %s676, %s689
          %p691 = scmp.ne.s32.totalorder 0, %s687
          %s692 = smul.addr %s683, 128
          %s693 = scalar_lea.hbm %s3, %s692
          %s694 = smul.u32 8, %s686
          %s695 = sshll.u32 %s679, 4
          %s696 = int_to_ptr.vmem [resolvable:$true] %s695
          %s697 = sshll.u32 %s694, 4
          %701 = dma.vmem_to_hbm [thread:$0]  (%p691), %s696, %s697, %s693, %s676, 128, 128, 8
        $region56: #{tpu_custom_call.1} parent=31 // pred_fallthru
          _
      $region32: #{tpu_custom_call.1} parent=5 // pred_fallthru
        _
      %p702 = scmp.le.s32.totalorder 2, %s18
      // Predicated region
      $region57: #{tpu_custom_call.1} parent=5 // pred_check
        %p703 = pneg %p702
      $region58: #{tpu_custom_call.1} parent=5 // pred_check_branch
        %705 = sbr.rel (%p703) target = $region60
      $region59: #{tpu_custom_call.1} parent=5 // pred_region
        %s706 = ssub.s32 %s18, 2
        // Predicated region
        $region61: #{tpu_custom_call.1} parent=59 // pred_check
          %p707 = pneg %p137
        $region62: #{tpu_custom_call.1} parent=59 // pred_check_branch
          %709 = sbr.rel (%p707) target = $region64
        $region63: #{tpu_custom_call.1} parent=59 // pred_region
          %s710 = sand.u32 %s122, 1
          %s711 = scalar_lea.sflag [#allocation5], %s710
          %s712 = sand.u32 %s122, 1
          %s713 = smul.addr %s712, 16
          %s714 = scalar_lea.vmem [#allocation9], %s713
          %715 = dma.done %s711, 256
        $region64: #{tpu_custom_call.1} parent=59 // pred_fallthru
          _
      $region60: #{tpu_custom_call.1} parent=5 // pred_fallthru
        _
    $region6: #{tpu_custom_call.1} parent=1 // loop_footer
      %s22 = sadd.s32 1, %s18
    $region7: #{tpu_custom_call.1} parent=1 // loop_footer_branch
      %17 = sbr.rel target = $region3
    $region8: #{tpu_custom_call.1} parent=1 // loop_exit
      _
    %716 = vsyncpa [#allocation4], 1
    %s717 = scalar_lea.sflag [#allocation4], 1
    %718 = vsyncpa %s717, 1
    %719 = vsyncpa [#allocation7], 1
    %s720 = scalar_lea.sflag [#allocation7], 1
    %721 = vsyncpa %s720, 1
    %722 = vsyncpa [#allocation5], 1
    %s723 = scalar_lea.sflag [#allocation5], 1
    %724 = vsyncpa %s723, 1

</llo_original>
